<compile_context>
chip_gen: v6e
topology: v6e:2x2x1
jax: 0.10.0
libtpu: 0.0.40
codegen_flags: <defaults>
</compile_context>

<pallas_src>
import jax
import jax.numpy as jnp
from jax.experimental import pallas as pl
from jax.experimental.pallas import tpu as pltpu

KSIZE = 3

# Non-zero taps (row_offset, col_offset, coefficient) of the frozen filter per mode.
_TAPS = {
    "h": ((0, -1, 1.0), (0, 0, -2.0), (0, 1, 1.0)),
    "v": ((-1, 0, 1.0), (0, 0, -2.0), (1, 0, 1.0)),
    "other": ((-1, -1, 1.0), (-1, 1, -1.0), (1, -1, -1.0), (1, 1, 1.0)),
}


def _make_kernel(H, W, taps):
    """Kernel over a (planes_per_block, H*W) lane-flattened tile."""
    HW = H * W

    def roll_lanes(v, shift):
        # Normalize to a non-negative static rotate amount (roll is cyclic mod HW).
        return pltpu.roll(v, shift=shift % HW, axis=1)

    need_col = any(ox != 0 for _, ox, _ in taps)
    need_row = any(oy != 0 for oy, _, _ in taps)

    def kernel(x_ref, o_ref):
        x = x_ref[...].astype(jnp.float32)                      # (Bp, H*W)
        shape = x.shape

        lane = None
        if need_col or need_row:
            lane = jax.lax.broadcasted_iota(jnp.int32, shape, 1)
        col = lane % W if need_col else None
        row = lane // W if need_row else None

        # Column-shifted + reflection-fixed copies, shared across taps.
        col_val = {}
        for ox in sorted({ox for _, ox, _ in taps}):
            if ox == 0:
                col_val[0] = x
            else:
                base = roll_lanes(x, -ox)        # x[h, w + ox] in the interior
                fix = roll_lanes(x, ox)          # reflected value at the border
                border = (col == 0) if ox < 0 else (col == W - 1)
                col_val[ox] = jnp.where(border, fix, base)

        acc = jnp.zeros(shape, jnp.float32)
        for oy, ox, coef in taps:
            v = col_val[ox]
            if oy != 0:
                base = roll_lanes(v, -oy * W)    # v[h + oy, w] in the interior
                fix = roll_lanes(v, oy * W)      # reflected row at the border
                border = (row == 0) if oy < 0 else (row == H - 1)
                v = jnp.where(border, fix, base)
            acc = acc + coef * v
        o_ref[...] = acc.astype(o_ref.dtype)

    return kernel


def second_order(x, mode="h", *, block_bytes=2 << 20):
    """Forward pass of SecondOrder. x: (N, C, H, W). Returns (N, C, H, W)."""
    N, C, H, W = x.shape
    assert H >= 2 and W >= 2, "ReflectionPad2d(1) requires H >= 2 and W >= 2"
    taps = _TAPS.get(mode, _TAPS["other"])

    P = N * C                  # independent depthwise planes
    HW = H * W
    x2 = x.reshape(P, HW)      # free reshape (row-major contiguous), no HBM pass

    # Planes per grid step: keep the (double-buffered) in+out blocks a few MiB
    # and the sublane dim a multiple of 8 (or the full plane count).
    itemsize = jnp.dtype(x.dtype).itemsize
    bp = max(1, block_bytes // (HW * itemsize))
    if bp >= P:
        bp = P
    else:
        bp = min(P, max(8, (bp // 8) * 8))
    # TODO(synk): for very large single planes (H*W*itemsize >> a few MiB), tile rows
    # within a plane with a 1-row halo instead of taking >= 8 whole planes per block.

    grid = (pl.cdiv(P, bp),)
    out2 = pl.pallas_call(
        _make_kernel(H, W, taps),
        out_shape=jax.ShapeDtypeStruct((P, HW), x.dtype),
        grid=grid,
        in_specs=[pl.BlockSpec((bp, HW), lambda i: (i, 0))],
        out_specs=pl.BlockSpec((bp, HW), lambda i: (i, 0)),
        compiler_params=pltpu.CompilerParams(
            dimension_semantics=("parallel",)),
    )(x2)
    return out2.reshape(N, C, H, W)


def make_second_order_weight(ksize=KSIZE, mode="h", dtype=jnp.float32):
    """The (ksize, ksize) frozen kernel from SecondOrder.weight_init (shared by all channels)."""
    k = jnp.zeros((ksize, ksize), dtype)
    mid = ksize // 2
    if mode == "h":
        k = k.at[mid, 0].set(1.0).at[mid, mid].set(-2.0).at[mid, -1].set(1.0)
    elif mode == "v":
        k = k.at[0, mid].set(1.0).at[mid, mid].set(-2.0).at[-1, mid].set(1.0)
    else:
        k = (k.at[0, 0].set(1.0).at[0, -1].set(-1.0)
              .at[-1, 0].set(-1.0).at[-1, -1].set(1.0))
    return k


def _reference(x, mode):
    """Pure-JAX reference: reflection pad + full 3x3 depthwise conv (all 9 taps)."""
    k = make_second_order_weight(KSIZE, mode)
    N, C, H, W = x.shape
    xp = jnp.pad(x, ((0, 0), (0, 0), (1, 1), (1, 1)), mode="reflect").astype(jnp.float32)
    out = jnp.zeros((N, C, H, W), jnp.float32)
    for di in range(KSIZE):
        for dj in range(KSIZE):
            out = out + k[di, dj] * xp[:, :, di:di + H, dj:dj + W]
    return out.astype(x.dtype)


if __name__ == "__main__":
    key = jax.random.PRNGKey(0)
    N, C, H, W = 2, 4, 16, 16
    x = jax.random.normal(key, (N, C, H, W), dtype=jnp.float32)

    for mode in ("h", "v", "corner"):  # 'corner' exercises the else-branch filter
        out = jax.block_until_ready(second_order(x, mode))
        ref = _reference(x, mode)
        assert out.shape == (N, C, H, W)
        assert jnp.allclose(out, ref, atol=1e-5, rtol=1e-5), f"mismatch for mode={mode}"

    print("KERNEL_OK")
</pallas_src>

<mosaic_0001>
module attributes {stable_mosaic.version = 11 : i64} {
  func.func @kernel(%arg0: i32, %arg1: memref<8x256xf32, #tpu.memory_space<vmem>>, %arg2: memref<8x256xf32, #tpu.memory_space<vmem>>) attributes {dimension_semantics = [#tpu.dimension_semantics<parallel>], iteration_bounds = array<i64: 1>, scalar_prefetch = 0 : i64, scratch_operands = 0 : i64, tpu.core_type = #tpu.core_type<tc>, window_params = [{transform_indices = @transform_0, window_bounds = array<i64: 8, 256>}, {transform_indices = @transform_1, window_bounds = array<i64: 8, 256>}]} {
    %c0 = arith.constant 0 : index
    %c0_0 = arith.constant 0 : index
    %0 = vector.load %arg1[%c0, %c0_0] : memref<8x256xf32, #tpu.memory_space<vmem>>, vector<8x256xf32>
    %1 = tpu.iota {dimensions = array<i32: 1>} : vector<8x256xi32>
    %c16_i32 = arith.constant 16 : i32
    %c0_i32 = arith.constant 0 : i32
    %2 = arith.cmpi eq, %c16_i32, %c0_i32 : i32
    %c1_i32 = arith.constant 1 : i32
    %3 = arith.select %2, %c1_i32, %c16_i32 : i32
    %4 = vector.broadcast %3 : i32 to vector<8x256xi32>
    %5 = arith.remsi %1, %4 : vector<8x256xi32>
    %c0_i32_1 = arith.constant 0 : i32
    %6 = vector.broadcast %c0_i32_1 : i32 to vector<8x256xi32>
    %7 = arith.cmpi ne, %5, %6 : vector<8x256xi32>
    %c0_i32_2 = arith.constant 0 : i32
    %8 = vector.broadcast %c0_i32_2 : i32 to vector<8x256xi32>
    %9 = arith.cmpi slt, %5, %8 : vector<8x256xi32>
    %c0_i32_3 = arith.constant 0 : i32
    %10 = arith.cmpi slt, %3, %c0_i32_3 : i32
    %11 = vector.broadcast %10 : i1 to vector<8x256xi1>
    %12 = vector.broadcast %11 : vector<8x256xi1> to vector<8x256xi1>
    %13 = arith.xori %9, %12 : vector<8x256xi1>
    %14 = arith.andi %13, %7 : vector<8x256xi1>
    %15 = vector.broadcast %3 : i32 to vector<8x256xi32>
    %16 = arith.addi %5, %15 : vector<8x256xi32>
    %17 = arith.select %14, %16, %5 : vector<8x256xi1>, vector<8x256xi32>
    %c1_i32_4 = arith.constant 1 : i32
    %18 = tpu.dynamic_rotate %0 by %c1_i32_4 dim 1 : vector<8x256xf32>, i32 -> vector<8x256xf32>
    %c255_i32 = arith.constant 255 : i32
    %19 = tpu.dynamic_rotate %0 by %c255_i32 dim 1 : vector<8x256xf32>, i32 -> vector<8x256xf32>
    %c0_i32_5 = arith.constant 0 : i32
    %20 = vector.broadcast %c0_i32_5 : i32 to vector<8x256xi32>
    %21 = arith.cmpi eq, %17, %20 : vector<8x256xi32>
    %22 = arith.select %21, %19, %18 : vector<8x256xi1>, vector<8x256xf32>
    %c255_i32_6 = arith.constant 255 : i32
    %23 = tpu.dynamic_rotate %0 by %c255_i32_6 dim 1 : vector<8x256xf32>, i32 -> vector<8x256xf32>
    %c1_i32_7 = arith.constant 1 : i32
    %24 = tpu.dynamic_rotate %0 by %c1_i32_7 dim 1 : vector<8x256xf32>, i32 -> vector<8x256xf32>
    %c15_i32 = arith.constant 15 : i32
    %25 = vector.broadcast %c15_i32 : i32 to vector<8x256xi32>
    %26 = arith.cmpi eq, %17, %25 : vector<8x256xi32>
    %27 = arith.select %26, %24, %23 : vector<8x256xi1>, vector<8x256xf32>
    %cst = arith.constant 0.000000e+00 : f32
    %28 = vector.broadcast %cst : f32 to vector<8x256xf32>
    %cst_8 = arith.constant 1.000000e+00 : f32
    %29 = vector.broadcast %cst_8 : f32 to vector<8x256xf32>
    %30 = arith.mulf %29, %22 : vector<8x256xf32>
    %31 = arith.addf %28, %30 : vector<8x256xf32>
    %cst_9 = arith.constant -2.000000e+00 : f32
    %32 = vector.broadcast %cst_9 : f32 to vector<8x256xf32>
    %33 = arith.mulf %32, %0 : vector<8x256xf32>
    %34 = arith.addf %31, %33 : vector<8x256xf32>
    %cst_10 = arith.constant 1.000000e+00 : f32
    %35 = vector.broadcast %cst_10 : f32 to vector<8x256xf32>
    %36 = arith.mulf %35, %27 : vector<8x256xf32>
    %37 = arith.addf %34, %36 : vector<8x256xf32>
    %c0_11 = arith.constant 0 : index
    %c0_12 = arith.constant 0 : index
    %38 = vector.load %arg2[%c0_11, %c0_12] : memref<8x256xf32, #tpu.memory_space<vmem>>, vector<8x256xf32>
    tpu.vector_store %arg2[%c0_11, %c0_12], %37 {strides = array<i32>} : memref<8x256xf32, #tpu.memory_space<vmem>>, vector<8x256xf32>,
    return
  }
  func.func @transform_0(%arg0: i32) -> (i32, i32) {
    %c0_i32 = arith.constant 0 : i32
    %c0_i32_0 = arith.constant 0 : i32
    return %arg0, %c0_i32 : i32, i32
  }
  func.func @transform_1(%arg0: i32) -> (i32, i32) {
    %c0_i32 = arith.constant 0 : i32
    %c0_i32_0 = arith.constant 0 : i32
    return %arg0, %c0_i32 : i32, i32
  }
}

</mosaic_0001>

<llo_original>
// kernel: tpu_custom_call.1
$region0: #{tpu_custom_call.1}
  #allocation0 [shape = 'u32[]', space=smem, size = 0x4, offset = 0x4, fixed_abs, tag = 'smem constant byte address 0x4 - core index']
  #allocation1 [shape = 'u32[144,128]{1,0:T(1,128)}', space=vmem, size = 0x12000, scoped, tag = 'internal scratch']
  %s0 = inlined_call_operand.hbm [shape: f32[8,256], index: 0, kind: input, shape index: {}]
  %s1 = inlined_call_operand.hbm [shape: f32[8,256], index: 1, kind: output, shape index: {}]
  %s2 = sld [smem:[#allocation0]]
  $region18: #{tpu_custom_call.1} parent=0
    _
  %s4 = ssub.s32 1, %s2
  %s5 = scalar_select 0, %s4, %s2
  $region1: #{tpu_custom_call.1} parent=0
    #allocation2 [shape = 'u8[8192]{0}', space=vmem, size = 0x2000, scoped, tag = 'input window, operand 0, single buffered']
    #allocation3 [shape = 's32[1]{0}', space=sflag, size = 0x4, scoped, tag = 'scoped memory for tpu_custom_call.1']
    #allocation4 [shape = 's32[1]{0}', space=sflag, size = 0x4, scoped, tag = 'scoped memory for tpu_custom_call.1']
    #allocation5 [shape = 'u8[8192]{0}', space=vmem, size = 0x2000, scoped, tag = 'output window, operand 0, single buffered']
    %6 = vsyncpa [#allocation3], 0
    %7 = vsyncpa [#allocation4], 0
    // Predicated region
    $region2: #{tpu_custom_call.1} parent=1 // pred_check
      _
    $region3: #{tpu_custom_call.1} parent=1 // pred_check_branch
      %9 = sbr.rel (0) target = $region5
    $region4: #{tpu_custom_call.1} parent=1 // pred_region
      %s11 = ssub.s32 256, 256
      %12 = vsyncadd [#allocation3], %s11
      %s14 = sshll.u32 [#allocation2], 4
      %s15 = int_to_ptr.vmem [resolvable:$true] %s14
      %17 = dma.hbm_to_vmem [thread:$0]  %s0, 256, %s15, [#allocation3]
    $region5: #{tpu_custom_call.1} parent=1 // pred_fallthru
      _
    // Predicated region
    $region6: #{tpu_custom_call.1} parent=1 // pred_check
      _
    $region7: #{tpu_custom_call.1} parent=1 // pred_check_branch
      %19 = sbr.rel (0) target = $region9
    $region8: #{tpu_custom_call.1} parent=1 // pred_region
      %20 = dma.done [#allocation3], 256
    $region9: #{tpu_custom_call.1} parent=1 // pred_fallthru
      _
    %v21 = vld [vmem:[#allocation2] sm:$0xff]
    %v22 = vld [vmem:[#allocation2 + $0x8] sm:$0xff]
    %v23 = vlaneseq
    %v24 = vand.u32 %v23, 127
    %v25 = vadd.s32 %v24, 128
    %vm26 = vcmp.lt.s32.totalorder %v24, 0
    %v27 = vsub.s32 0, %v24
    %v28 = vsel %vm26, %v27, %v24
    %v29 = vshrl.u32 %v28, 4
    %v30 = vand.u32 %v28, 15
    %v31 = vsub.s32 0, %v30
    %v32 = vsel %vm26, %v31, %v30
    %vm33 = vcmp.lt.s32.totalorder %v25, 0
    %v34 = vsub.s32 0, %v25
    %v35 = vsel %vm33, %v34, %v25
    %v36 = vshrl.u32 %v35, 4
    %v37 = vand.u32 %v35, 15
    %v38 = vsub.s32 0, %v37
    %v39 = vsel %vm33, %v38, %v37
    %vm40 = vcmp.ne.s32.totalorder %v32, 0
    %vm41 = vcmp.ne.s32.totalorder %v39, 0
    %vm42 = vcmp.lt.s32.totalorder %v32, 0
    %vm43 = vcmp.lt.s32.totalorder %v39, 0
    %vm44 = vmand %vm42, %vm40
    %vm45 = vmand %vm43, %vm41
    %v46 = vadd.s32 %v32, 16
    %v47 = vadd.s32 %v39, 16
    %v48 = vsel %vm44, %v46, %v32
    %v49 = vsel %vm45, %v47, %v39
    %50 = vrot.lane.b32.xlu0 %v21, 1
    %v51 = vpop.permute.xlu0 %50
    %52 = vrot.lane.b32.xlu0 %v22, 1
    %v53 = vpop.permute.xlu0 %52
    %vm54 = vcmp.lt.s32.totalorder %v24, 1
    %v55 = vsel %vm54, %v51, %v53
    %v56 = vsel %vm54, %v53, %v51
    %57 = vrot.lane.b32.xlu0 %v21, 127
    %v58 = vpop.permute.xlu0 %57
    %59 = vrot.lane.b32.xlu0 %v22, 127
    %v60 = vpop.permute.xlu0 %59
    %vm61 = vcmp.lt.s32.totalorder %v24, 127
    %v62 = vsel %vm61, %v58, %v60
    %v63 = vsel %vm61, %v60, %v58
    %vm64 = vcmp.eq.s32.totalorder %v48, 0
    %vm65 = vcmp.eq.s32.totalorder %v49, 0
    %v66 = vsel %vm64, %v62, %v56
    %v67 = vsel %vm65, %v63, %v55
    %vm68 = vcmp.eq.s32.totalorder %v48, 15
    %vm69 = vcmp.eq.s32.totalorder %v49, 15
    %v70 = vsel %vm68, %v56, %v62
    %v71 = vsel %vm69, %v55, %v63
    %v72 = vadd.f32 %v66, 0.0
    %v73 = vadd.f32 %v67, 0.0
    %v74 = vmul.f32 %v21, -2.0
    %v75 = vmul.f32 %v22, -2.0
    %v76 = vadd.f32 %v72, %v74
    %v77 = vadd.f32 %v73, %v75
    %v78 = vadd.f32 %v76, %v70
    %v79 = vadd.f32 %v77, %v71
    %80 = vst [vmem:[#allocation5] sm:$0xff] %v78
    %81 = vst [vmem:[#allocation5 + $0x8] sm:$0xff] %v79
    // Predicated region
    $region10: #{tpu_custom_call.1} parent=1 // pred_check
      _
    $region11: #{tpu_custom_call.1} parent=1 // pred_check_branch
      %83 = sbr.rel (0) target = $region13
    $region12: #{tpu_custom_call.1} parent=1 // pred_region
      %s85 = ssub.s32 256, 256
      %86 = vsyncadd [#allocation4], %s85
      %s88 = sshll.u32 [#allocation5], 4
      %s89 = int_to_ptr.vmem [resolvable:$true] %s88
      %91 = dma.vmem_to_hbm [thread:$0]  %s89, 256, %s1, [#allocation4]
    $region13: #{tpu_custom_call.1} parent=1 // pred_fallthru
      _
    // Predicated region
    $region14: #{tpu_custom_call.1} parent=1 // pred_check
      _
    $region15: #{tpu_custom_call.1} parent=1 // pred_check_branch
      %93 = sbr.rel (0) target = $region17
    $region16: #{tpu_custom_call.1} parent=1 // pred_region
      %94 = dma.done [#allocation4], 256
    $region17: #{tpu_custom_call.1} parent=1 // pred_fallthru
      _
    %95 = vsyncpa [#allocation3], 1
    %96 = vsyncpa [#allocation4], 1

</llo_original>
